<compile_context>
chip_gen: v6e
topology: v6e:2x2x1
jax: 0.10.0
libtpu: 0.0.40
codegen_flags: <defaults>
</compile_context>

<pallas_src>
import functools

import jax
import jax.numpy as jnp
from jax.experimental import pallas as pl
from jax.experimental.pallas import tpu as pltpu


# ----------------------------------------------------------------------------- kernel
def abae_kernel(z_ref, w_ref, b_ref, t_ref, rs_ref, pt_ref):
    # bf16 operands for both MXU dots (no-op if the caller already passes bf16);
    # f32 accumulation preserves accuracy.
    z = z_ref[...].astype(jnp.bfloat16)       # [TB, D]
    w = w_ref[...].astype(jnp.bfloat16)       # [D, A_PAD]
    bias = b_ref[...]                         # [1, A_PAD] f32 (padded lanes = -1e30)
    t = t_ref[...].astype(jnp.bfloat16)       # [A_PAD, D]

    # Linear: z @ W^T + b   (W stored pre-transposed as [D, A_PAD]).
    logits = jnp.dot(z, w, preferred_element_type=jnp.float32) + bias   # [TB, A_PAD] f32

    # Softmax over the aspect axis (f32). Padded lanes carry -1e30 -> exp underflows to 0.
    m = jnp.max(logits, axis=-1, keepdims=True)
    e = jnp.exp(logits - m)
    p_t = e / jnp.sum(e, axis=-1, keepdims=True)                        # exact divide, [TB, A_PAD]

    # r_s = F.normalize(p_t @ T, dim=-1); padded p_t lanes are exactly 0 so the zero
    # rows of the padded T contribute nothing.
    r = jnp.dot(p_t.astype(jnp.bfloat16), t,
                preferred_element_type=jnp.float32)                     # [TB, D] f32
    norm = jnp.sqrt(jnp.sum(r * r, axis=-1, keepdims=True))
    r_s = r / jnp.maximum(norm, 1e-12)        # torch F.normalize semantics (eps on the norm)

    rs_ref[...] = r_s.astype(rs_ref.dtype)
    pt_ref[...] = p_t.astype(pt_ref.dtype)


# ----------------------------------------------------------------------------- helpers
def _round_up(x, m):
    return (x + m - 1) // m * m


def _cdiv(a, b):
    return -(-a // b)


def _select_tiling(b_rows, d, a_pad, in_itemsize, out_itemsize):
    """Chip-/dtype-aware batch tiling.

    Returns (TB, n_steps, vmem_limit_bytes). TB is a multiple of the dtype-correct
    sublane group; n_steps * TB >= b_rows with at most ~one sublane group of padding
    per step; the tile budget and vmem_limit_bytes are derived from the same VMEM
    capacity number and include the in-kernel f32 intermediates.
    """
    # Sublane multiple: 8 for f32, 16 for bf16, 32 for int8/fp8.
    sub = max(8, 32 // max(in_itemsize, 1))

    try:
        vmem_cap = int(pltpu.get_tpu_info().vmem_capacity_bytes)
    except Exception:
        vmem_cap = 64 * 1024 * 1024          # conservative (v7x-sized) fallback
    small_vmem = vmem_cap <= 96 * 1024 * 1024  # v7x: 64 MiB VMEM, 2 TensorCores

    # Working-set budget and per-step row cap.
    budget = min(int(vmem_cap * 0.55), 64 * 1024 * 1024)
    row_cap = 1024 if small_vmem else 2048

    # Grid-invariant params (W, b, T), double-buffered by the pipeline.
    param_bytes = 2 * ((d * a_pad + a_pad * d) * in_itemsize + a_pad * 4)
    avail = max(budget - param_bytes, 1 << 20)

    # Per-row bytes: z tile in + r_s/p_t tiles out (2-deep pipeline buffers),
    # f32 kernel intermediates (logits/e/p_t, r/r_s) and bf16 MXU operand copies.
    per_row = (2 * d * in_itemsize
               + 2 * (d + a_pad) * out_itemsize
               + (3 * a_pad + 2 * d) * 4
               + (d + a_pad) * 2)

    tb_max = int(avail // per_row) // sub * sub
    tb_max = max(sub, min(tb_max, row_cap))

    # Number of grid steps: enough to cover B; on 2-TensorCore parts force >=2 steps
    # (when B is big enough) so the "parallel" axis can shard across both cores.
    n_steps = max(1, _cdiv(b_rows, tb_max))
    if small_vmem and b_rows >= 2 * sub:
        n_steps = max(n_steps, 2)

    # Balance the tile so wrapper-side batch padding stays ~one sublane group per step.
    tb = _round_up(_cdiv(b_rows, n_steps), sub)

    working = param_bytes + tb * per_row
    vmem_limit = max(32 * 1024 * 1024, working + (8 << 20))
    vmem_limit = min(vmem_limit, int(vmem_cap * 0.9))
    return int(tb), int(n_steps), int(vmem_limit)


def prepare_abae_params(W_t, b, T):
    """Pad the frozen parameters to a 128-lane aspect axis ONCE at init.

    W_t: [D, A] linear weight (pre-transposed), b: [A], T: [A, D].
    Keeping this out of the per-forward path removes the per-call pad-and-copy of
    W and T (comparable to the kernel's own HBM traffic for small batches).
    """
    D, A = W_t.shape
    A_PAD = _round_up(max(A, 128), 128)
    W_p = jnp.zeros((D, A_PAD), W_t.dtype).at[:, :A].set(W_t)
    # Padded bias lanes = -1e30 so softmax gives them exactly 0 probability.
    b_p = jnp.full((1, A_PAD), -1e30, jnp.float32).at[0, :A].set(b.astype(jnp.float32))
    T_p = jnp.zeros((A_PAD, T.shape[1]), T.dtype).at[:A, :].set(T)
    return W_p, b_p, T_p, A


# ----------------------------------------------------------------------------- forward
@functools.partial(jax.jit, static_argnames=("n_aspects",))
def abae_forward(z_s, z_n, W_p, b_p, T_p, *, n_aspects):
    """Pallas implementation of ABAE.forward.

    z_s: [B, D]     pooler output of `pos`   (BERT stand-in)
    z_n: [N, B, D]  stacked pooler outputs of `negs` (pass-through, no compute)
    W_p/b_p/T_p: pre-padded params from prepare_abae_params.
    Returns (r_s, z_s, z_n, p_t) exactly like the PyTorch module.
    Note: r_s / p_t are emitted in z_s.dtype (matches PyTorch, which inherits the
    activation dtype).
    """
    B, D = z_s.shape
    A_PAD = T_p.shape[0]
    out_dtype = z_s.dtype
    itemsize = jnp.dtype(z_s.dtype).itemsize

    TB, n_steps, vmem_limit = _select_tiling(B, D, A_PAD, itemsize, itemsize)
    B_PAD = TB * n_steps
    z_p = z_s if B_PAD == B else jnp.pad(z_s, ((0, B_PAD - B), (0, 0)))

    r_s_p, p_t_p = pl.pallas_call(
        abae_kernel,
        out_shape=(
            jax.ShapeDtypeStruct((B_PAD, D), out_dtype),
            jax.ShapeDtypeStruct((B_PAD, A_PAD), out_dtype),
        ),
        grid_spec=pltpu.PrefetchScalarGridSpec(
            num_scalar_prefetch=0,
            grid=(n_steps,),
            in_specs=[
                pl.BlockSpec((TB, D), lambda i: (i, 0)),        # z_s tile
                pl.BlockSpec((D, A_PAD), lambda i: (0, 0)),     # W     (grid-invariant)
                pl.BlockSpec((1, A_PAD), lambda i: (0, 0)),     # bias  (grid-invariant)
                pl.BlockSpec((A_PAD, D), lambda i: (0, 0)),     # T     (grid-invariant)
            ],
            out_specs=[
                pl.BlockSpec((TB, D), lambda i: (i, 0)),        # r_s tile
                pl.BlockSpec((TB, A_PAD), lambda i: (i, 0)),    # p_t tile (lane-dense)
            ],
        ),
        compiler_params=pltpu.CompilerParams(
            dimension_semantics=("parallel",),
            vmem_limit_bytes=vmem_limit,
        ),
    )(z_p, W_p, b_p, T_p)

    r_s = r_s_p if B_PAD == B else r_s_p[:B, :]
    p_t = p_t_p[:B, :n_aspects]

    # forward returns (r_s, z_s, z_n, p_t); z_s / z_n are BERT outputs passed straight
    # through (no compute on them in the original module either).
    return r_s, z_s, z_n, p_t


# ----------------------------------------------------------------------------- demo
if __name__ == "__main__":
    # Small but tile-friendly shapes: batch=8, d_embed=128, n_aspects=16, negs=2
    B, D, A, N_NEG = 8, 128, 16, 2

    key = jax.random.PRNGKey(0)
    k1, k2, k3, k4, k5 = jax.random.split(key, 5)

    # Deterministic "parameters" (shapes from the module __init__)
    T = jax.random.normal(k1, (A, D), dtype=jnp.float32)           # aspect matrix (frozen)
    W_t = jax.random.normal(k2, (D, A), dtype=jnp.float32) * 0.05  # nn.Linear weight^T
    b = jax.random.normal(k3, (A,), dtype=jnp.float32) * 0.05      # nn.Linear bias

    # Synthetic BERT pooler outputs standing in for self.bert(pos / negs)
    z_s = jax.random.normal(k4, (B, D), dtype=jnp.float32)
    z_n = jax.random.normal(k5, (N_NEG, B, D), dtype=jnp.float32)

    # One-time parameter padding (init-time, not per call).
    W_p, b_p, T_p, n_aspects = prepare_abae_params(W_t, b, T)

    r_s, z_s_out, z_n_out, p_t = abae_forward(z_s, z_n, W_p, b_p, T_p, n_aspects=n_aspects)
    jax.block_until_ready((r_s, z_s_out, z_n_out, p_t))

    # ---- Self-checks -----------------------------------------------------------
    bf16 = jnp.bfloat16
    f32 = jnp.float32

    # (1) Tight check of the softmax path against a reference that mirrors the
    #     kernel's bf16 MXU operands (f32 accumulation).
    logits_ref = jnp.dot(z_s.astype(bf16), W_t.astype(bf16),
                         preferred_element_type=f32) + b
    p_ref = jax.nn.softmax(logits_ref, axis=1)
    assert jnp.allclose(p_t, p_ref, atol=1e-5, rtol=1e-5)

    # (2) Tight check of the normalize path, driven by the kernel's own p_t.
    r_chk = jnp.dot(p_t.astype(bf16), T.astype(bf16), preferred_element_type=f32)
    r_chk = r_chk / jnp.maximum(jnp.linalg.norm(r_chk, axis=-1, keepdims=True), 1e-12)
    assert jnp.allclose(r_s, r_chk, atol=1e-5, rtol=1e-5)

    # (3) Loose sanity check against the pure-f32 PyTorch-equivalent math
    #     (bf16 MXU operands introduce ~1e-3 level differences, by design).
    logits_f32 = z_s @ W_t + b
    p_f32 = jax.nn.softmax(logits_f32, axis=1)
    r_f32 = p_f32 @ T
    r_f32 = r_f32 / jnp.maximum(jnp.linalg.norm(r_f32, axis=-1, keepdims=True), 1e-12)
    assert jnp.allclose(p_t, p_f32, atol=2e-2, rtol=2e-2)
    assert jnp.allclose(r_s, r_f32, atol=2e-2, rtol=2e-2)

    # (4) Pass-throughs are untouched.
    assert jnp.allclose(z_s_out, z_s)
    assert jnp.allclose(z_n_out, z_n)

    print("KERNEL_OK")
</pallas_src>

<mosaic_0001>
module attributes {stable_mosaic.version = 11 : i64} {
  func.func @abae_kernel(%arg0: i32, %arg1: memref<8x128xf32, #tpu.memory_space<vmem>>, %arg2: memref<128x128xf32, #tpu.memory_space<vmem>>, %arg3: memref<1x128xf32, #tpu.memory_space<vmem>>, %arg4: memref<128x128xf32, #tpu.memory_space<vmem>>, %arg5: memref<8x128xf32, #tpu.memory_space<vmem>>, %arg6: memref<8x128xf32, #tpu.memory_space<vmem>>) attributes {dimension_semantics = [#tpu.dimension_semantics<parallel>], iteration_bounds = array<i64: 1>, scalar_prefetch = 0 : i64, scratch_operands = 0 : i64, tpu.core_type = #tpu.core_type<tc>, window_params = [{transform_indices = @transform_0, window_bounds = array<i64: 8, 128>}, {pipeline_mode = #tpu.pipeline_mode<synchronous>, transform_indices = @transform_1, window_bounds = array<i64: 128, 128>}, {pipeline_mode = #tpu.pipeline_mode<synchronous>, transform_indices = @transform_2, window_bounds = array<i64: 1, 128>}, {pipeline_mode = #tpu.pipeline_mode<synchronous>, transform_indices = @transform_3, window_bounds = array<i64: 128, 128>}, {transform_indices = @transform_4, window_bounds = array<i64: 8, 128>}, {transform_indices = @transform_5, window_bounds = array<i64: 8, 128>}]} {
    %c0 = arith.constant 0 : index
    %c0_0 = arith.constant 0 : index
    %0 = vector.load %arg1[%c0, %c0_0] : memref<8x128xf32, #tpu.memory_space<vmem>>, vector<8x128xf32>
    %1 = arith.truncf %0 : vector<8x128xf32> to vector<8x128xbf16>
    %c0_1 = arith.constant 0 : index
    %c0_2 = arith.constant 0 : index
    %2 = vector.load %arg2[%c0_1, %c0_2] : memref<128x128xf32, #tpu.memory_space<vmem>>, vector<128x128xf32>
    %3 = arith.truncf %2 : vector<128x128xf32> to vector<128x128xbf16>
    %c0_3 = arith.constant 0 : index
    %c0_4 = arith.constant 0 : index
    %4 = vector.load %arg3[%c0_3, %c0_4] : memref<1x128xf32, #tpu.memory_space<vmem>>, vector<1x128xf32>
    %c0_5 = arith.constant 0 : index
    %c0_6 = arith.constant 0 : index
    %5 = vector.load %arg4[%c0_5, %c0_6] : memref<128x128xf32, #tpu.memory_space<vmem>>, vector<128x128xf32>
    %6 = arith.truncf %5 : vector<128x128xf32> to vector<128x128xbf16>
    %cst = arith.constant dense<0.000000e+00> : vector<8x128xf32>
    %7 = tpu.matmul %1, %3, %cst {dimension_numbers = #tpu.dot_dimension_numbers<[1], [0], [0], [1], [0, 0, 1, 1], [], []>} : vector<8x128xbf16>, vector<128x128xbf16>, vector<8x128xf32> -> vector<8x128xf32>
    %8 = vector.broadcast %4 : vector<1x128xf32> to vector<8x128xf32>
    %9 = arith.addf %7, %8 : vector<8x128xf32>
    %cst_7 = arith.constant dense<0xFF800000> : vector<8xf32>
    %10 = vector.multi_reduction <maximumf>, %9, %cst_7 [1] : vector<8x128xf32> to vector<8xf32>
    %11 = vector.shape_cast %10 : vector<8xf32> to vector<8x1xf32>
    %12 = vector.broadcast %11 : vector<8x1xf32> to vector<8x128xf32>
    %13 = arith.subf %9, %12 : vector<8x128xf32>
    %14 = math.exp %13 : vector<8x128xf32>
    %cst_8 = arith.constant dense<0.000000e+00> : vector<8xf32>
    %15 = vector.multi_reduction <add>, %14, %cst_8 [1] : vector<8x128xf32> to vector<8xf32>
    %16 = vector.shape_cast %15 : vector<8xf32> to vector<8x1xf32>
    %17 = vector.broadcast %16 : vector<8x1xf32> to vector<8x128xf32>
    %18 = arith.divf %14, %17 : vector<8x128xf32>
    %19 = arith.truncf %18 : vector<8x128xf32> to vector<8x128xbf16>
    %cst_9 = arith.constant dense<0.000000e+00> : vector<8x128xf32>
    %20 = tpu.matmul %19, %6, %cst_9 {dimension_numbers = #tpu.dot_dimension_numbers<[1], [0], [0], [1], [0, 0, 1, 1], [], []>} : vector<8x128xbf16>, vector<128x128xbf16>, vector<8x128xf32> -> vector<8x128xf32>
    %21 = arith.mulf %20, %20 : vector<8x128xf32>
    %cst_10 = arith.constant dense<0.000000e+00> : vector<8xf32>
    %22 = vector.multi_reduction <add>, %21, %cst_10 [1] : vector<8x128xf32> to vector<8xf32>
    %23 = vector.shape_cast %22 : vector<8xf32> to vector<8x1xf32>
    %24 = math.sqrt %23 : vector<8x1xf32>
    %cst_11 = arith.constant 9.99999996E-13 : f32
    %25 = vector.broadcast %cst_11 : f32 to vector<8x1xf32>
    %26 = arith.maximumf %24, %25 : vector<8x1xf32>
    %27 = vector.broadcast %26 : vector<8x1xf32> to vector<8x128xf32>
    %28 = arith.divf %20, %27 : vector<8x128xf32>
    %c0_12 = arith.constant 0 : index
    %c0_13 = arith.constant 0 : index
    %29 = vector.load %arg5[%c0_12, %c0_13] : memref<8x128xf32, #tpu.memory_space<vmem>>, vector<8x128xf32>
    tpu.vector_store %arg5[%c0_12, %c0_13], %28 {strides = array<i32>} : memref<8x128xf32, #tpu.memory_space<vmem>>, vector<8x128xf32>,
    %c0_14 = arith.constant 0 : index
    %c0_15 = arith.constant 0 : index
    %30 = vector.load %arg6[%c0_14, %c0_15] : memref<8x128xf32, #tpu.memory_space<vmem>>, vector<8x128xf32>
    tpu.vector_store %arg6[%c0_14, %c0_15], %18 {strides = array<i32>} : memref<8x128xf32, #tpu.memory_space<vmem>>, vector<8x128xf32>,
    return
  }
  func.func @transform_0(%arg0: i32) -> (i32, i32) {
    %c0_i32 = arith.constant 0 : i32
    %c0_i32_0 = arith.constant 0 : i32
    return %arg0, %c0_i32 : i32, i32
  }
  func.func @transform_1(%arg0: i32) -> (i32, i32) {
    %c0_i32 = arith.constant 0 : i32
    %c0_i32_0 = arith.constant 0 : i32
    %c0_i32_1 = arith.constant 0 : i32
    return %c0_i32, %c0_i32_0 : i32, i32
  }
  func.func @transform_2(%arg0: i32) -> (i32, i32) {
    %c0_i32 = arith.constant 0 : i32
    %c0_i32_0 = arith.constant 0 : i32
    %c0_i32_1 = arith.constant 0 : i32
    return %c0_i32, %c0_i32_0 : i32, i32
  }
  func.func @transform_3(%arg0: i32) -> (i32, i32) {
    %c0_i32 = arith.constant 0 : i32
    %c0_i32_0 = arith.constant 0 : i32
    %c0_i32_1 = arith.constant 0 : i32
    return %c0_i32, %c0_i32_0 : i32, i32
  }
  func.func @transform_4(%arg0: i32) -> (i32, i32) {
    %c0_i32 = arith.constant 0 : i32
    %c0_i32_0 = arith.constant 0 : i32
    return %arg0, %c0_i32 : i32, i32
  }
  func.func @transform_5(%arg0: i32) -> (i32, i32) {
    %c0_i32 = arith.constant 0 : i32
    %c0_i32_0 = arith.constant 0 : i32
    return %arg0, %c0_i32 : i32, i32
  }
}

</mosaic_0001>

<llo_original>
// kernel: abae_forward.1
$region0: #{abae_forward.1}
  #allocation0 [shape = 'u32[]', space=smem, size = 0x4, offset = 0x4, fixed_abs, tag = 'smem constant byte address 0x4 - core index']
  #allocation1 [shape = 'u32[144,128]{1,0:T(1,128)}', space=vmem, size = 0x12000, scoped, tag = 'internal scratch']
  %s0 = inlined_call_operand.hbm [shape: f32[8,128], index: 0, kind: input, shape index: {}]
  %s1 = inlined_call_operand.hbm [shape: f32[128,128], index: 1, kind: input, shape index: {}]
  %s2 = inlined_call_operand.vmem [shape: f32[1,128], index: 2, kind: input, shape index: {}]
  %s3 = inlined_call_operand.hbm [shape: f32[128,128], index: 3, kind: input, shape index: {}]
  %s4 = inlined_call_operand.hbm [shape: f32[8,128], index: 4, kind: output, shape index: {0}]
  %s5 = inlined_call_operand.hbm [shape: f32[8,128], index: 5, kind: output, shape index: {1}]
  %6 = xla_tuple %s4, %s5
  %s7 = sld [smem:[#allocation0]]
  $region46: #{abae_forward.1} parent=0
    _
  %s9 = ssub.s32 1, %s7
  %s10 = scalar_select 0, %s9, %s7
  $region1: #{abae_forward.1} parent=0
    #allocation2 [shape = 'u8[4096]{0}', space=vmem, size = 0x1000, scoped, tag = 'input window, operand 0, single buffered']
    #allocation3 [shape = 's32[1]{0}', space=sflag, size = 0x4, scoped, tag = 'scoped memory for abae_forward.1']
    #allocation4 [shape = 's32[1]{0}', space=sflag, size = 0x4, scoped, tag = 'scoped memory for abae_forward.1']
    #allocation5 [shape = 'u8[65536]{0}', space=vmem, size = 0x10000, scoped, tag = 'input window, operand 1, single buffered']
    #allocation6 [shape = 's32[1]{0}', space=sflag, size = 0x4, scoped, tag = 'scoped memory for abae_forward.1']
    #allocation7 [shape = 'u8[65536]{0}', space=vmem, size = 0x10000, scoped, tag = 'input window, operand 3, single buffered']
    #allocation8 [shape = 'u8[4096]{0}', space=vmem, size = 0x1000, scoped, tag = 'output window, operand 0, single buffered']
    #allocation9 [shape = 'u8[4096]{0}', space=vmem, size = 0x1000, scoped, tag = 'output window, operand 1, single buffered']
    #allocation10 [shape = 's32[1]{0}', space=sflag, size = 0x4, scoped, tag = 'scoped memory for abae_forward.1']
    %11 = vsyncpa [#allocation3], 0
    %12 = vsyncpa [#allocation6], 0
    %13 = vsyncpa [#allocation4], 0
    %14 = vsyncpa [#allocation10], 0
    // Predicated region
    $region2: #{abae_forward.1} parent=1 // pred_check
      _
    $region3: #{abae_forward.1} parent=1 // pred_check_branch
      %16 = sbr.rel (0) target = $region5
    $region4: #{abae_forward.1} parent=1 // pred_region
      %s18 = ssub.s32 128, 128
      %19 = vsyncadd [#allocation3], %s18
      %s21 = sshll.u32 [#allocation2], 4
      %s22 = int_to_ptr.vmem [resolvable:$true] %s21
      %24 = dma.hbm_to_vmem [thread:$0]  %s0, 128, %s22, [#allocation3]
    $region5: #{abae_forward.1} parent=1 // pred_fallthru
      _
    // Predicated region
    $region6: #{abae_forward.1} parent=1 // pred_check
      _
    $region7: #{abae_forward.1} parent=1 // pred_check_branch
      %26 = sbr.rel (0) target = $region9
    $region8: #{abae_forward.1} parent=1 // pred_region
      %s28 = ssub.s32 2048, 2048
      %29 = vsyncadd [#allocation6], %s28
      %s30 = sshll.u32 [#allocation5], 4
      %s31 = int_to_ptr.vmem [resolvable:$true] %s30
      %36 = dma.hbm_to_vmem [thread:$0]  %s1, 2048, %s31, [#allocation6], 128, 128, 8
    $region9: #{abae_forward.1} parent=1 // pred_fallthru
      _
    // Predicated region
    $region10: #{abae_forward.1} parent=1 // pred_check
      _
    $region11: #{abae_forward.1} parent=1 // pred_check_branch
      %38 = sbr.rel (0) target = $region13
    $region12: #{abae_forward.1} parent=1 // pred_region
      _
    $region13: #{abae_forward.1} parent=1 // pred_fallthru
      _
    // Predicated region
    $region14: #{abae_forward.1} parent=1 // pred_check
      _
    $region15: #{abae_forward.1} parent=1 // pred_check_branch
      %40 = sbr.rel (0) target = $region17
    $region16: #{abae_forward.1} parent=1 // pred_region
      %s42 = ssub.s32 2048, 2048
      %43 = vsyncadd [#allocation6], %s42
      %s44 = sshll.u32 [#allocation7], 4
      %s45 = int_to_ptr.vmem [resolvable:$true] %s44
      %50 = dma.hbm_to_vmem [thread:$0]  %s3, 2048, %s45, [#allocation6], 128, 128, 8
    $region17: #{abae_forward.1} parent=1 // pred_fallthru
      _
    // Predicated region
    $region18: #{abae_forward.1} parent=1 // pred_check
      _
    $region19: #{abae_forward.1} parent=1 // pred_check_branch
      %52 = sbr.rel (0) target = $region21
    $region20: #{abae_forward.1} parent=1 // pred_region
      %53 = dma.done [#allocation3], 128
    $region21: #{abae_forward.1} parent=1 // pred_fallthru
      _
    // Predicated region
    $region22: #{abae_forward.1} parent=1 // pred_check
      _
    $region23: #{abae_forward.1} parent=1 // pred_check_branch
      %55 = sbr.rel (0) target = $region25
    $region24: #{abae_forward.1} parent=1 // pred_region
      %56 = dma.done [#allocation6], 2048
    $region25: #{abae_forward.1} parent=1 // pred_fallthru
      _
    // Predicated region
    $region26: #{abae_forward.1} parent=1 // pred_check
      _
    $region27: #{abae_forward.1} parent=1 // pred_check_branch
      %58 = sbr.rel (0) target = $region29
    $region28: #{abae_forward.1} parent=1 // pred_region
      %59 = dma.done [#allocation6], 2048
    $region29: #{abae_forward.1} parent=1 // pred_fallthru
      _
    %v61 = vld [vmem:[#allocation2] sm:$0xff]
    %v62 = vpack.c.bf16 %v61, %v61
    %v63 = vld [vmem:[#allocation5] sm:$0xff]
    %v64 = vld [vmem:[#allocation5 + $0x8] sm:$0xff]
    %v65 = vld [vmem:[#allocation5 + $0x10] sm:$0xff]
    %v66 = vld [vmem:[#allocation5 + $0x18] sm:$0xff]
    %v67 = vld [vmem:[#allocation5 + $0x20] sm:$0xff]
    %v68 = vld [vmem:[#allocation5 + $0x28] sm:$0xff]
    %v69 = vld [vmem:[#allocation5 + $0x30] sm:$0xff]
    %v70 = vld [vmem:[#allocation5 + $0x38] sm:$0xff]
    %v71 = vld [vmem:[#allocation5 + $0x40] sm:$0xff]
    %v72 = vld [vmem:[#allocation5 + $0x48] sm:$0xff]
    %v73 = vld [vmem:[#allocation5 + $0x50] sm:$0xff]
    %v74 = vld [vmem:[#allocation5 + $0x58] sm:$0xff]
    %v75 = vld [vmem:[#allocation5 + $0x60] sm:$0xff]
    %v76 = vld [vmem:[#allocation5 + $0x68] sm:$0xff]
    %v77 = vld [vmem:[#allocation5 + $0x70] sm:$0xff]
    %v78 = vld [vmem:[#allocation5 + $0x78] sm:$0xff]
    %v79 = vpack.c.bf16 %v64, %v63
    %v80 = vpack.c.bf16 %v66, %v65
    %v81 = vpack.c.bf16 %v68, %v67
    %v82 = vpack.c.bf16 %v70, %v69
    %v83 = vpack.c.bf16 %v72, %v71
    %v84 = vpack.c.bf16 %v74, %v73
    %v85 = vpack.c.bf16 %v76, %v75
    %v86 = vpack.c.bf16 %v78, %v77
    %v87 = vld [vmem:[%s2] sm:$0x1]
    %v88 = vld [vmem:[#allocation7] sm:$0xff]
    %v89 = vld [vmem:[#allocation7 + $0x8] sm:$0xff]
    %v90 = vld [vmem:[#allocation7 + $0x10] sm:$0xff]
    %v91 = vld [vmem:[#allocation7 + $0x18] sm:$0xff]
    %v92 = vld [vmem:[#allocation7 + $0x20] sm:$0xff]
    %v93 = vld [vmem:[#allocation7 + $0x28] sm:$0xff]
    %v94 = vld [vmem:[#allocation7 + $0x30] sm:$0xff]
    %v95 = vld [vmem:[#allocation7 + $0x38] sm:$0xff]
    %v96 = vld [vmem:[#allocation7 + $0x40] sm:$0xff]
    %v97 = vld [vmem:[#allocation7 + $0x48] sm:$0xff]
    %v98 = vld [vmem:[#allocation7 + $0x50] sm:$0xff]
    %v99 = vld [vmem:[#allocation7 + $0x58] sm:$0xff]
    %v100 = vld [vmem:[#allocation7 + $0x60] sm:$0xff]
    %v101 = vld [vmem:[#allocation7 + $0x68] sm:$0xff]
    %v102 = vld [vmem:[#allocation7 + $0x70] sm:$0xff]
    %v103 = vld [vmem:[#allocation7 + $0x78] sm:$0xff]
    %v104 = vpack.c.bf16 %v89, %v88
    %v105 = vpack.c.bf16 %v91, %v90
    %v106 = vpack.c.bf16 %v93, %v92
    %v107 = vpack.c.bf16 %v95, %v94
    %v108 = vpack.c.bf16 %v97, %v96
    %v109 = vpack.c.bf16 %v99, %v98
    %v110 = vpack.c.bf16 %v101, %v100
    %v111 = vpack.c.bf16 %v103, %v102
    %v113 = vlaneseq
    %v114 = vshrl.u32 %v113, 7
    %v115 = vsub.s32 0, %v114
    %v116 = vrot.slane %v87, %v115
    %118 = vmatprep.subr.bf16.mxu0 0
    %119 = vmatpush1.bf16.msra.mxu0 %v86
    %120 = vmatprep.subr.bf16.mxu0 0
    %121 = vmatpush1.bf16.msra.mxu0 %v85
    %122 = vmatprep.subr.bf16.mxu0 0
    %123 = vmatpush1.bf16.msra.mxu0 %v84
    %124 = vmatprep.subr.bf16.mxu0 0
    %125 = vmatpush1.bf16.msra.mxu0 %v83
    %126 = vmatprep.subr.bf16.mxu0 0
    %127 = vmatpush1.bf16.msra.mxu0 %v82
    %128 = vmatprep.subr.bf16.mxu0 0
    %129 = vmatpush1.bf16.msra.mxu0 %v81
    %130 = vmatprep.subr.bf16.mxu0 0
    %131 = vmatpush1.bf16.msra.mxu0 %v80
    %132 = vmatprep.subr.bf16.mxu0 0
    %133 = vmatpush1.bf16.msra.mxu0 %v79
    %134 = vmatprep.subr.bf16.mxu0 0
    %135 = vmatpush2.bf16.msra.mxu0 0
    %136 = vmatprep.subr.bf16.mxu0 0
    %137 = vmatpush2.bf16.msra.mxu0 0
    %138 = vmatprep.subr.bf16.mxu0 0
    %139 = vmatpush2.bf16.msra.mxu0 0
    %140 = vmatprep.subr.bf16.mxu0 0
    %141 = vmatpush2.bf16.msra.mxu0 0
    %142 = vmatprep.subr.bf16.mxu0 0
    %143 = vmatpush2.bf16.msra.mxu0 0
    %144 = vmatprep.subr.bf16.mxu0 0
    %145 = vmatpush2.bf16.msra.mxu0 0
    %146 = vmatprep.subr.bf16.mxu0 0
    %147 = vmatpush2.bf16.msra.mxu0 0
    %148 = vmatprep.subr.bf16.mxu0 0
    %149 = vmatpush2.bf16.msra.mxu0 0
    %150 = vmatprep.mubr.bf16.mxu0 0
    %151 = vmatmul.mubr.bf16.gmra.mxu0 %v62
    %v152 = vpop.f32.mrf.mxu0
    %v153 = vadd.f32 %v116, %v152
    %v154 = vpop.f32.mrf.mxu0
    %v155 = vpop.f32.mrf.mxu0
    %v156 = vpop.f32.mrf.mxu0
    %157 = vdwg.mxu0
    %158 = vmax.xlane.f32.xlu0 %v153
    %v159 = vpop.xlane.xlu0 %158
    %v160 = vsub.f32 %v153, %v159
    %v161 = vmul.f32 %v160, 1.442695
    %v162 = vpow.pop %v161
    %163 = vadd.xlane.f32.xlu0 %v162
    %v164 = vpop.xlane.xlu0 %163
    %v165 = vrcp.pop %v164
    %v166 = vmul.f32 %v162, %v165
    %v167 = vpack.c.bf16 %v166, %v166
    %168 = vmatprep.subr.bf16.mxu0 0
    %169 = vmatpush1.bf16.msra.mxu0 %v111
    %170 = vmatprep.subr.bf16.mxu0 0
    %171 = vmatpush1.bf16.msra.mxu0 %v110
    %172 = vmatprep.subr.bf16.mxu0 0
    %173 = vmatpush1.bf16.msra.mxu0 %v109
    %174 = vmatprep.subr.bf16.mxu0 0
    %175 = vmatpush1.bf16.msra.mxu0 %v108
    %176 = vmatprep.subr.bf16.mxu0 0
    %177 = vmatpush1.bf16.msra.mxu0 %v107
    %178 = vmatprep.subr.bf16.mxu0 0
    %179 = vmatpush1.bf16.msra.mxu0 %v106
    %180 = vmatprep.subr.bf16.mxu0 0
    %181 = vmatpush1.bf16.msra.mxu0 %v105
    %182 = vmatprep.subr.bf16.mxu0 0
    %183 = vmatpush1.bf16.msra.mxu0 %v104
    %184 = vmatprep.subr.bf16.mxu0 0
    %185 = vmatpush2.bf16.msra.mxu0 0
    %186 = vmatprep.subr.bf16.mxu0 0
    %187 = vmatpush2.bf16.msra.mxu0 0
    %188 = vmatprep.subr.bf16.mxu0 0
    %189 = vmatpush2.bf16.msra.mxu0 0
    %190 = vmatprep.subr.bf16.mxu0 0
    %191 = vmatpush2.bf16.msra.mxu0 0
    %192 = vmatprep.subr.bf16.mxu0 0
    %193 = vmatpush2.bf16.msra.mxu0 0
    %194 = vmatprep.subr.bf16.mxu0 0
    %195 = vmatpush2.bf16.msra.mxu0 0
    %196 = vmatprep.subr.bf16.mxu0 0
    %197 = vmatpush2.bf16.msra.mxu0 0
    %198 = vmatprep.subr.bf16.mxu0 0
    %199 = vmatpush2.bf16.msra.mxu0 0
    %200 = vmatprep.mubr.bf16.mxu0 0
    %201 = vmatmul.mubr.bf16.gmra.mxu0 %v167
    %v202 = vpop.f32.mrf.mxu0
    %v203 = vadd.f32 0.0, %v202
    %v204 = vpop.f32.mrf.mxu0
    %v205 = vpop.f32.mrf.mxu0
    %v206 = vpop.f32.mrf.mxu0
    %207 = vdwg.mxu0
    %v208 = vmul.f32 %v203, %v203
    %209 = vadd.xlane.f32.xlu0 %v208
    %v210 = vpop.xlane.xlu0 %209
    %v211 = vrsqrt.pop %v210
    %v212 = vmul.f32 %v210, %v211
    %vm213 = vcmp.eq.f32.partialorder %v210, inf
    %v214 = vsel %vm213, %v210, %v212
    %vm215 = vcmp.eq.f32.partialorder %v210, 0.0
    %v216 = vand.u32 %v210, 2147483648
    %v217 = vsel %vm215, %v216, %v214
    %v218 = vmax.f32 %v217, 1e-12
    %v219 = vrcp.pop %v218
    %v220 = vmul.f32 %v203, %v219
    %221 = vst [vmem:[#allocation8] sm:$0xff] %v220
    %222 = vst [vmem:[#allocation9] sm:$0xff] %v166
    // Predicated region
    $region30: #{abae_forward.1} parent=1 // pred_check
      _
    $region31: #{abae_forward.1} parent=1 // pred_check_branch
      %224 = sbr.rel (0) target = $region33
    $region32: #{abae_forward.1} parent=1 // pred_region
      %s226 = ssub.s32 128, 128
      %227 = vsyncadd [#allocation4], %s226
      %s229 = sshll.u32 [#allocation8], 4
      %s230 = int_to_ptr.vmem [resolvable:$true] %s229
      %232 = dma.vmem_to_hbm [thread:$0]  %s230, 128, %s4, [#allocation4]
    $region33: #{abae_forward.1} parent=1 // pred_fallthru
      _
    // Predicated region
    $region34: #{abae_forward.1} parent=1 // pred_check
      _
    $region35: #{abae_forward.1} parent=1 // pred_check_branch
      %234 = sbr.rel (0) target = $region37
    $region36: #{abae_forward.1} parent=1 // pred_region
      %s236 = ssub.s32 128, 128
      %237 = vsyncadd [#allocation10], %s236
      %s239 = sshll.u32 [#allocation9], 4
      %s240 = int_to_ptr.vmem [resolvable:$true] %s239
      %242 = dma.vmem_to_hbm [thread:$0]  %s240, 128, %s5, [#allocation10]
    $region37: #{abae_forward.1} parent=1 // pred_fallthru
      _
    // Predicated region
    $region38: #{abae_forward.1} parent=1 // pred_check
      _
    $region39: #{abae_forward.1} parent=1 // pred_check_branch
      %244 = sbr.rel (0) target = $region41
    $region40: #{abae_forward.1} parent=1 // pred_region
      %245 = dma.done [#allocation4], 128
    $region41: #{abae_forward.1} parent=1 // pred_fallthru
      _
    // Predicated region
    $region42: #{abae_forward.1} parent=1 // pred_check
      _
    $region43: #{abae_forward.1} parent=1 // pred_check_branch
      %247 = sbr.rel (0) target = $region45
    $region44: #{abae_forward.1} parent=1 // pred_region
      %248 = dma.done [#allocation10], 128
    $region45: #{abae_forward.1} parent=1 // pred_fallthru
      _
    %249 = vsyncpa [#allocation3], 1
    %250 = vsyncpa [#allocation6], 1
    %251 = vsyncpa [#allocation4], 1
    %252 = vsyncpa [#allocation10], 1

</llo_original>
